<compile_context>
chip_gen: v6e
topology: v6e:2x2x1
jax: 0.10.0
libtpu: 0.0.40
codegen_flags: <defaults>
</compile_context>

<pallas_src>
import jax
import jax.numpy as jnp
from jax.experimental import pallas as pl
from jax.experimental.pallas import tpu as pltpu


def _band_zero_kernel(blk_ids_ref, x_ref, keep_ref, o_ref):
    """Rewrite one (bc_blk, f_blk, T) block with the combined keep-mask.

    Rows with keep == 0 are stored as literal 0 (torchaudio `where`
    semantics), rows with keep != 0 pass through unchanged, so visiting a
    block more than once (overlapping masks / duplicate block ids) is
    idempotent and safe regardless of DMA ordering.
    """
    del blk_ids_ref  # only consumed by the index_maps
    o_ref[...] = jnp.where(keep_ref[...] != 0, x_ref[...], 0)


def _largest_divisor_leq(total: int, cap: int) -> int:
    cap = max(1, min(total, cap))
    for d in range(cap, 0, -1):
        if total % d == 0:
            return d
    return 1


def _apply_freq_mask(x3d, keep3d, blk_ids, f_blk):
    BC, F, T = x3d.shape
    itemsize = jnp.dtype(x3d.dtype).itemsize
    n_band_blocks = int(blk_ids.shape[0])

    # BC tile: as fat as fits a ~4 MiB block (double-buffered in + out stays
    # well under the 32 MiB scoped-VMEM limit that is safe on v5e/v6e/v7x).
    bc_cap = max(1, (4 * 1024 * 1024) // max(1, f_blk * T * itemsize))
    bc_blk = _largest_divisor_leq(BC, bc_cap)
    n_bc = BC // bc_blk
    # Give v7x's two TensorCores something to split on the "parallel" BC axis,
    # but only when BC is big: on single-TC v5e/v6e extra steps are pure
    # overhead and the FT/lane extent is never shrunk to manufacture steps.
    if n_bc == 1 and BC >= 16 and BC % 2 == 0:
        bc_blk //= 2
        n_bc = 2

    grid = (n_bc, n_band_blocks)

    return pl.pallas_call(
        _band_zero_kernel,
        out_shape=jax.ShapeDtypeStruct((BC, F, T), x3d.dtype),
        grid_spec=pltpu.PrefetchScalarGridSpec(
            num_scalar_prefetch=1,
            grid=grid,
            in_specs=[
                pl.BlockSpec((bc_blk, f_blk, T), lambda i, j, blk: (i, blk[j], 0)),
                pl.BlockSpec((1, f_blk, T), lambda i, j, blk: (0, blk[j], 0)),
            ],
            out_specs=pl.BlockSpec((bc_blk, f_blk, T), lambda i, j, blk: (i, blk[j], 0)),
        ),
        # Flat input index 1 is x3d (index 0 is the prefetched blk_ids array).
        # Only the visited band blocks are rewritten; everything else keeps the
        # aliased input bytes, so there is no full-tensor read or write.
        # TODO(synk): callers that can donate x (jax.jit donate_argnums) avoid
        # XLA's defensive copy of the aliased operand and make this fully
        # in-place.
        input_output_aliases={1: 0},
        compiler_params=pltpu.CompilerParams(
            dimension_semantics=("parallel", "arbitrary"),
            vmem_limit_bytes=32 * 1024 * 1024,
        ),
    )(blk_ids, x3d, keep3d)


def spec_freq_mask(x, key, *, num_masks, size, p=0.5):
    """Functional equivalent of SpecFreqMask.forward (randomness driven by `key`)."""
    B, C, F, T = x.shape
    if num_masks <= 0 or size <= 0:
        return x

    # ---- randomness / band construction (plain JAX glue, O(F) work) ----
    k_apply, *k_masks = jax.random.split(key, 1 + 2 * num_masks)
    apply = jax.random.uniform(k_apply, ()) <= p          # random.random() <= p

    # 8-row (f32) / 16-row (bf16) F-blocks; fall back to full F when it does
    # not tile cleanly (still correct, just no band restriction).
    itemsize = jnp.dtype(x.dtype).itemsize
    sub_unit = {4: 8, 2: 16, 1: 32}.get(itemsize, 8)
    f_blk = sub_unit if (F % sub_unit == 0 and F > sub_unit) else F
    n_f_blocks = F // f_blk

    fidx = jnp.arange(F, dtype=jnp.int32)
    masked_rows = jnp.zeros((F,), dtype=jnp.bool_)
    starts = []
    for m in range(num_masks):                            # static unroll (num_masks small)
        width = jax.random.uniform(k_masks[2 * m], ()) * size          # U(0, size)
        lo = jax.random.uniform(k_masks[2 * m + 1], ()) * (F - width)  # U(0, F - width)
        s = lo.astype(jnp.int32)
        e = (lo + width).astype(jnp.int32)
        masked_rows = masked_rows | ((fidx >= s) & (fidx < e))
        starts.append(s)

    # Coin flip folded into the keep-mask: no lax.cond (no identity-branch copy
    # of x); a failed flip just writes the (tiny) band back unchanged.
    keep_f = jnp.where(masked_rows & apply, 0.0, 1.0)
    keep3d = jnp.broadcast_to(keep_f[None, :, None].astype(jnp.float32), (1, F, T))

    # F-block ids that can contain masked rows: static count, dynamic values.
    # Clipped overshoot / duplicates only re-apply the combined keep-mask.
    if n_f_blocks <= 1:
        blk_ids = jnp.zeros((1,), dtype=jnp.int32)
    else:
        blocks_per_mask = min(size // f_blk + 2, n_f_blocks)
        offs = jnp.arange(blocks_per_mask, dtype=jnp.int32)
        cand = [jnp.clip(s // f_blk + offs, 0, n_f_blocks - 1) for s in starts]
        blk_ids = jnp.concatenate(cand).astype(jnp.int32)

    x3d = x.reshape(B * C, F, T)
    y3d = _apply_freq_mask(x3d, keep3d, blk_ids, f_blk)
    return y3d.reshape(B, C, F, T)


if __name__ == "__main__":
    # Module config: SpecFreqMask(num_masks=2, size=4, p=0.5)
    NUM_MASKS, SIZE, P = 2, 4, 0.5

    key = jax.random.PRNGKey(0)
    k_x, k_rng = jax.random.split(key)

    B, C, F, T = 2, 4, 16, 16
    x = jax.random.normal(k_x, (B, C, F, T), dtype=jnp.float32)

    def reference(x, key, num_masks, size, p):
        # Pure-JAX reference with the same RNG stream / torchaudio semantics.
        k_apply, *k_masks = jax.random.split(key, 1 + 2 * num_masks)
        apply = jax.random.uniform(k_apply, ()) <= p
        fidx = jnp.arange(x.shape[2])[None, None, :, None]
        ref = x
        for m in range(num_masks):
            width = jax.random.uniform(k_masks[2 * m], ()) * size
            lo = jax.random.uniform(k_masks[2 * m + 1], ()) * (x.shape[2] - width)
            s = lo.astype(jnp.int32)
            e = (lo + width).astype(jnp.int32)
            ref = jnp.where(apply & (fidx >= s) & (fidx < e), 0.0, ref)
        return ref

    # Module config (p=0.5): coin flip may or may not apply the masks.
    y = spec_freq_mask(x, k_rng, num_masks=NUM_MASKS, size=SIZE, p=P)
    jax.block_until_ready(y)
    assert jnp.allclose(y, reference(x, k_rng, NUM_MASKS, SIZE, P)), "mismatch (p=0.5)"

    # p=1.0 guarantees the masking kernel actually zeroes a band.
    y1 = spec_freq_mask(x, k_rng, num_masks=NUM_MASKS, size=SIZE, p=1.0)
    jax.block_until_ready(y1)
    assert jnp.allclose(y1, reference(x, k_rng, NUM_MASKS, SIZE, 1.0)), "mismatch (p=1.0)"

    print("KERNEL_OK")
</pallas_src>

<mosaic_0001>
module attributes {stable_mosaic.version = 11 : i64} {
  func.func @_band_zero_kernel(%arg0: i32, %arg1: i32, %arg2: memref<4xi32, #tpu.memory_space<smem>>, %arg3: memref<8x8x16xf32, #tpu.memory_space<vmem>>, %arg4: memref<1x8x16xf32, #tpu.memory_space<vmem>>, %arg5: memref<8x8x16xf32, #tpu.memory_space<vmem>>) attributes {dimension_semantics = [#tpu.dimension_semantics<parallel>, #tpu.dimension_semantics<arbitrary>], iteration_bounds = array<i64: 1, 4>, scalar_prefetch = 1 : i64, scratch_operands = 0 : i64, tpu.core_type = #tpu.core_type<tc>, window_params = [{transform_indices = @transform_0, window_bounds = array<i64: 8, 8, 16>}, {transform_indices = @transform_1, window_bounds = array<i64: 1, 8, 16>}, {transform_indices = @transform_2, window_bounds = array<i64: 8, 8, 16>}]} {
    %c0 = arith.constant 0 : index
    %c0_0 = arith.constant 0 : index
    %c0_1 = arith.constant 0 : index
    %0 = vector.load %arg4[%c0, %c0_0, %c0_1] : memref<1x8x16xf32, #tpu.memory_space<vmem>>, vector<1x8x16xf32>
    %cst = arith.constant 0.000000e+00 : f32
    %1 = vector.broadcast %cst : f32 to vector<1x8x16xf32>
    %2 = arith.cmpf one, %0, %1 : vector<1x8x16xf32>
    %c0_2 = arith.constant 0 : index
    %c0_3 = arith.constant 0 : index
    %c0_4 = arith.constant 0 : index
    %3 = vector.load %arg3[%c0_2, %c0_3, %c0_4] : memref<8x8x16xf32, #tpu.memory_space<vmem>>, vector<8x8x16xf32>
    %c0_i32 = arith.constant 0 : i32
    %4 = arith.sitofp %c0_i32 : i32 to f32
    %5 = vector.shape_cast %2 : vector<1x8x16xi1> to vector<1x8x16xi1>
    %6 = vector.broadcast %5 : vector<1x8x16xi1> to vector<8x8x16xi1>
    %7 = vector.broadcast %4 : f32 to vector<8x8x16xf32>
    %8 = arith.select %6, %3, %7 : vector<8x8x16xi1>, vector<8x8x16xf32>
    %c0_5 = arith.constant 0 : index
    %c0_6 = arith.constant 0 : index
    %c0_7 = arith.constant 0 : index
    %9 = vector.load %arg5[%c0_5, %c0_6, %c0_7] : memref<8x8x16xf32, #tpu.memory_space<vmem>>, vector<8x8x16xf32>
    tpu.vector_store %arg5[%c0_5, %c0_6, %c0_7], %8 {strides = array<i32>} : memref<8x8x16xf32, #tpu.memory_space<vmem>>, vector<8x8x16xf32>,
    return
  }
  func.func @transform_0(%arg0: i32, %arg1: i32, %arg2: memref<4xi32, #tpu.memory_space<smem>>) -> (i32, i32, i32) {
    %0 = arith.index_cast %arg1 : i32 to index
    %1 = memref.load %arg2[%0] : memref<4xi32, #tpu.memory_space<smem>>
    %c0_i32 = arith.constant 0 : i32
    %c0_i32_0 = arith.constant 0 : i32
    return %arg0, %1, %c0_i32 : i32, i32, i32
  }
  func.func @transform_1(%arg0: i32, %arg1: i32, %arg2: memref<4xi32, #tpu.memory_space<smem>>) -> (i32, i32, i32) {
    %0 = arith.index_cast %arg1 : i32 to index
    %1 = memref.load %arg2[%0] : memref<4xi32, #tpu.memory_space<smem>>
    %c0_i32 = arith.constant 0 : i32
    %c0_i32_0 = arith.constant 0 : i32
    %c0_i32_1 = arith.constant 0 : i32
    return %c0_i32, %1, %c0_i32_0 : i32, i32, i32
  }
  func.func @transform_2(%arg0: i32, %arg1: i32, %arg2: memref<4xi32, #tpu.memory_space<smem>>) -> (i32, i32, i32) {
    %0 = arith.index_cast %arg1 : i32 to index
    %1 = memref.load %arg2[%0] : memref<4xi32, #tpu.memory_space<smem>>
    %c0_i32 = arith.constant 0 : i32
    %c0_i32_0 = arith.constant 0 : i32
    return %arg0, %1, %c0_i32 : i32, i32, i32
  }
}

</mosaic_0001>

<llo_original>
// kernel: tpu_custom_call.1
$region0: #{tpu_custom_call.1}
  #allocation0 [shape = 'u32[]', space=smem, size = 0x4, offset = 0x4, fixed_abs, tag = 'smem constant byte address 0x4 - core index']
  #allocation1 [shape = 'u32[144,128]{1,0:T(1,128)}', space=vmem, size = 0x12000, scoped, tag = 'internal scratch']
  #allocation2 [shape = 's32[1]{0}', space=sflag, size = 0x4, scoped, tag = 'scoped memory for tpu_custom_call.1']
  #allocation3 [shape = 'u8[512]{0}', space=smem, size = 0x200, scoped, tag = 'prefetched SMEM operand 0']
  %s0 = inlined_call_operand.vmem [shape: s32[4], index: 0, kind: input, shape index: {}]
  %s1 = inlined_call_operand.hbm [shape: f32[8,16,16], index: 1, kind: input, shape index: {}, may-alias: {1,3}]
  %s2 = inlined_call_operand.vmem [shape: f32[1,16,16], index: 2, kind: input, shape index: {}]
  %s3 = inlined_call_operand.hbm [shape: f32[8,16,16], index: 3, kind: output, shape index: {}, may-alias: {1,3}]
  %s4 = sld [smem:[#allocation0]]
  $region45: #{tpu_custom_call.1} parent=0
    _
  %s6 = ssub.s32 1, %s4
  %s7 = scalar_select 0, %s6, %s4
  %s8 = sshll.u32 %s0, 4
  %s9 = int_to_ptr.vmem [resolvable:$true] %s8
  %11 = dma.vmem_to_smem %s9, 16, [#allocation3], [#allocation2]
  %12 = dma.done [#allocation2], 16
  %13 = sfence
  $region1: #{tpu_custom_call.1} parent=0
    #allocation4 [shape = 'u8[65536]{0}', space=vmem, size = 0x10000, scoped, tag = 'input window, operand 1']
    #allocation5 [shape = 's32[2]{0}', space=sflag, size = 0x8, scoped, tag = 'scoped memory for tpu_custom_call.1']
    #allocation6 [shape = 's32[2]{0}', space=sflag, size = 0x8, scoped, tag = 'scoped memory for tpu_custom_call.1']
    #allocation7 [shape = 'u8[65536]{0}', space=vmem, size = 0x10000, scoped, tag = 'output window, operand 0']
    %14 = vsyncpa [#allocation5], 0
    %s15 = scalar_lea.sflag [#allocation5], 1
    %16 = vsyncpa %s15, 0
    %17 = vsyncpa [#allocation6], 0
    %s18 = scalar_lea.sflag [#allocation6], 1
    %19 = vsyncpa %s18, 0
    loop: start=0, step=1, limit=6
    $region2: #{tpu_custom_call.1} parent=1 // loop_pre_header
      _
    $region3: #{tpu_custom_call.1} parent=1 // loop_header
      %s21 = sphi 0, %s25
      %p22 = scmp.ge.s32.totalorder %s21, 6
      %s28 = sphi 0, %s40
      %s29 = sphi 0, %s36
      %s30 = sphi 0, %s28
      %s31 = sphi 0, %s29
      %s32 = sphi 0, %s30
      %s33 = sphi 0, %s31
      %s47 = sphi 0, %s49
      %s50 = sphi 0, %s47
      %s51 = sphi 0, %s50
      %s67 = sphi 0, %s51
      %s75 = sphi 0, %s77
      %s78 = sphi 0, %s75
      %s79 = sphi 0, %s78
      %s95 = sphi 0, %s79
      %s105 = sphi 0, %s107
      %s108 = sphi 0, %s105
      %s109 = sphi 0, %s108
      %s125 = sphi 0, %s109
    $region4: #{tpu_custom_call.1} parent=1 // loop_header_branch
      %24 = sbr.rel (%p22) target = $region8
    $region5: #{tpu_custom_call.1} parent=1 // loop_body
      %s26 = ssub.s32 %s21, 1
      %s27 = ssub.s32 %s21, 2
      %s34 = sadd.s32 1, %s29
      %p35 = scmp.ge.s32.totalorder %s34, 4
      %s36 = scalar_select %p35, 0, %s34
      %s37 = sadd.s32 1, %s28
      %s38 = scalar_select %p35, %s37, %s28
      %p39 = scmp.ge.s32.totalorder %s38, 1
      %s40 = scalar_select %p39, 0, %s38
      %s41 = sld [smem:[#allocation3 + %s29]]
      %s42 = sld [smem:[#allocation3 + %s36]]
      %s43 = ssub.s32 %s28, %s40
      %s44 = ssub.s32 %s41, %s42
      %s45 = sor.u32 %s43, %s44
      %p46 = scmp.eq.s32.totalorder %s45, 0
      %s48 = sadd.s32 %s47, 1
      %s49 = scalar_select %p46, %s47, %s48
      %p52 = pneg %p46
      %p53 = scmp.eq.s32.totalorder %s21, 3
      %p54 = por %p52, %p53
      %p55 = scmp.ne.s32.totalorder %s47, %s50
      %p56 = scmp.eq.s32.totalorder %s21, 0
      %p57 = por %p55, %p56
      %p58 = scmp.ne.s32.totalorder %s47, %s50
      %p59 = scmp.eq.s32.totalorder %s26, 3
      %p60 = por %p58, %p59
      %p61 = scmp.ne.s32.totalorder %s50, %s51
      %p62 = scmp.eq.s32.totalorder %s26, 0
      %p63 = por %p61, %p62
      %p64 = scmp.ne.s32.totalorder %s50, %s51
      %p65 = scmp.eq.s32.totalorder %s27, 3
      %p66 = por %p64, %p65
      %p68 = scmp.ne.s32.totalorder %s51, %s67
      %p69 = scmp.eq.s32.totalorder %s27, 0
      %p70 = por %p68, %p69
      %s71 = sld [smem:[#allocation3 + %s29]]
      %s72 = sld [smem:[#allocation3 + %s36]]
      %s73 = ssub.s32 %s71, %s72
      %p74 = scmp.eq.s32.totalorder %s73, 0
      %s76 = sadd.s32 %s75, 1
      %s77 = scalar_select %p74, %s75, %s76
      %p80 = pneg %p74
      %p81 = scmp.eq.s32.totalorder %s21, 3
      %p82 = por %p80, %p81
      %p83 = scmp.ne.s32.totalorder %s75, %s78
      %p84 = scmp.eq.s32.totalorder %s21, 0
      %p85 = por %p83, %p84
      %p86 = scmp.ne.s32.totalorder %s75, %s78
      %p87 = scmp.eq.s32.totalorder %s26, 3
      %p88 = por %p86, %p87
      %p89 = scmp.ne.s32.totalorder %s78, %s79
      %p90 = scmp.eq.s32.totalorder %s26, 0
      %p91 = por %p89, %p90
      %p92 = scmp.ne.s32.totalorder %s78, %s79
      %p93 = scmp.eq.s32.totalorder %s27, 3
      %p94 = por %p92, %p93
      %p96 = scmp.ne.s32.totalorder %s79, %s95
      %p97 = scmp.eq.s32.totalorder %s27, 0
      %p98 = por %p96, %p97
      %s99 = sld [smem:[#allocation3 + %s29]]
      %s100 = sld [smem:[#allocation3 + %s36]]
      %s101 = ssub.s32 %s28, %s40
      %s102 = ssub.s32 %s99, %s100
      %s103 = sor.u32 %s101, %s102
      %p104 = scmp.eq.s32.totalorder %s103, 0
      %s106 = sadd.s32 %s105, 1
      %s107 = scalar_select %p104, %s105, %s106
      %p110 = pneg %p104
      %p111 = scmp.eq.s32.totalorder %s21, 3
      %p112 = por %p110, %p111
      %p113 = scmp.ne.s32.totalorder %s105, %s108
      %p114 = scmp.eq.s32.totalorder %s21, 0
      %p115 = por %p113, %p114
      %p116 = scmp.ne.s32.totalorder %s105, %s108
      %p117 = scmp.eq.s32.totalorder %s26, 3
      %p118 = por %p116, %p117
      %p119 = scmp.ne.s32.totalorder %s108, %s109
      %p120 = scmp.eq.s32.totalorder %s26, 0
      %p121 = por %p119, %p120
      %p122 = scmp.ne.s32.totalorder %s108, %s109
      %p123 = scmp.eq.s32.totalorder %s27, 3
      %p124 = por %p122, %p123
      %p126 = scmp.ne.s32.totalorder %s109, %s125
      %p127 = scmp.eq.s32.totalorder %s27, 0
      %p128 = por %p126, %p127
      %p129 = scmp.le.s32.totalorder 1, %s21
      %p130 = scmp.lt.s32.totalorder %s21, 5
      %p131 = pnand %p129, %p130
      %p132 = pneg %p131
      // Predicated region
      $region9: #{tpu_custom_call.1} parent=5 // pred_check
        _
      $region10: #{tpu_custom_call.1} parent=5 // pred_check_branch
        %134 = sbr.rel (%p131) target = $region12
      $region11: #{tpu_custom_call.1} parent=5 // pred_region
        %s135 = ssub.s32 %s21, 1
      $region12: #{tpu_custom_call.1} parent=5 // pred_fallthru
        _
      %p136 = scmp.lt.s32.totalorder %s21, 4
      // Predicated region
      $region13: #{tpu_custom_call.1} parent=5 // pred_check
        %p137 = pneg %p136
      $region14: #{tpu_custom_call.1} parent=5 // pred_check_branch
        %139 = sbr.rel (%p137) target = $region16
      $region15: #{tpu_custom_call.1} parent=5 // pred_region
        // Predicated region
        $region17: #{tpu_custom_call.1} parent=15 // pred_check
          %p140 = pneg %p57
        $region18: #{tpu_custom_call.1} parent=15 // pred_check_branch
          %142 = sbr.rel (%p140) target = $region20
        $region19: #{tpu_custom_call.1} parent=15 // pred_region
          %s143 = sand.u32 %s47, 1
          %s144 = scalar_lea.sflag [#allocation5], %s143
          %s145 = sand.u32 %s47, 1
          %s146 = smul.addr %s145, 64
          %s147 = scalar_lea.vmem [#allocation4], %s146
          %s148 = sld [smem:[#allocation3 + %s29]]
          %s149 = smul.u32 8, %s28
          %s151 = ssub.s32 1024, 1024
          %152 = vsyncadd %s144, %s151
          %s153 = smul.addr %s149, 2
          %s154 = sadd.s32 %s148, %s153
          %s155 = smul.addr %s154, 128
          %s156 = scalar_lea.hbm %s1, %s155
          %s157 = sshll.u32 %s147, 4
          %s158 = int_to_ptr.vmem [resolvable:$true] %s157
          %163 = dma.hbm_to_vmem [thread:$0]  %s156, 1024, %s158, %s144, 256, 128, 8
        $region20: #{tpu_custom_call.1} parent=15 // pred_fallthru
          _
        // Predicated region
        $region21: #{tpu_custom_call.1} parent=15 // pred_check
          %p164 = pneg %p85
        $region22: #{tpu_custom_call.1} parent=15 // pred_check_branch
          %166 = sbr.rel (%p164) target = $region24
        $region23: #{tpu_custom_call.1} parent=15 // pred_region
          %s167 = sld [smem:[#allocation3 + %s29]]
          %p168 = scmp.lt.s32.totalorder %s167, 1
          %s169 = scalar_select %p168, %s167, 1
          %s170 = smul.addr %s169, 8
          %s171 = scalar_lea.vmem %s2, %s170
          %s172 = sld [smem:[#allocation3 + %s29]]
        $region24: #{tpu_custom_call.1} parent=15 // pred_fallthru
          _
      $region16: #{tpu_custom_call.1} parent=5 // pred_fallthru
        _
      %p173 = scmp.le.s32.totalorder 1, %s21
      %p174 = scmp.lt.s32.totalorder %s21, 5
      %p175 = pnand %p173, %p174
      %p176 = pneg %p175
      // Predicated region
      $region25: #{tpu_custom_call.1} parent=5 // pred_check
        _
      $region26: #{tpu_custom_call.1} parent=5 // pred_check_branch
        %178 = sbr.rel (%p175) target = $region28
      $region27: #{tpu_custom_call.1} parent=5 // pred_region
        %s179 = ssub.s32 %s21, 1
        %s180 = sand.u32 %s50, 1
        %s181 = scalar_lea.sflag [#allocation5], %s180
        %s182 = sand.u32 %s50, 1
        %s183 = smul.addr %s182, 64
        %s184 = scalar_lea.vmem [#allocation4], %s183
        // Predicated region
        $region29: #{tpu_custom_call.1} parent=27 // pred_check
          %p185 = pneg %p63
        $region30: #{tpu_custom_call.1} parent=27 // pred_check_branch
          %187 = sbr.rel (%p185) target = $region32
        $region31: #{tpu_custom_call.1} parent=27 // pred_region
          %188 = dma.done %s181, 1024
        $region32: #{tpu_custom_call.1} parent=27 // pred_fallthru
          _
        %s189 = sand.u32 %s50, 1
        %s190 = scalar_lea.sflag [#allocation5], %s189
        %s191 = sand.u32 %s50, 1
        %s192 = smul.addr %s191, 64
        %s193 = scalar_lea.vmem [#allocation4], %s192
        %p194 = pneg %p63
        %p195 = pneg %p60
        %s196 = sld [smem:[#allocation3 + %s31]]
        %p197 = scmp.lt.s32.totalorder %s196, 1
        %s198 = scalar_select %p197, %s196, 1
        %s199 = smul.addr %s198, 8
        %s200 = scalar_lea.vmem %s2, %s199
        %p201 = pneg %p91
        %p202 = pneg %p88
        %p203 = pneg %p121
        %p204 = pneg %p118
        %s205 = sand.u32 %s108, 1
        %s206 = scalar_lea.sflag [#allocation6], %s205
        %s207 = sand.u32 %s108, 1
        %s208 = smul.addr %s207, 64
        %s209 = scalar_lea.vmem [#allocation7], %s208
        %s210 = sld [smem:[#allocation3 + %s31]]
        %s211 = smul.u32 8, %s30
        %s212 = sld [smem:[#allocation3 + %s31]]
        %p213 = scmp.lt.s32.totalorder %s212, 1
        %s214 = scalar_select %p213, %s212, 1
        %s215 = smul.addr %s214, 8
        %s216 = scalar_lea.vmem %s2, %s215
        %s217 = sld [smem:[#allocation3 + %s31]]
        %s218 = sld [smem:[#allocation3 + %s31]]
        %s219 = smul.u32 8, %s30
        %v220 = vld [vmem:[%s216] sm:$0xff]
        %vm221 = vcmp.ne.f32.partialorder %v220, 0.0
        %v222 = vld [vmem:[%s184] sm:$0xff]
        %v223 = vld [vmem:[%s184 + $0x8] sm:$0xff]
        %v224 = vld [vmem:[%s184 + $0x10] sm:$0xff]
        %v225 = vld [vmem:[%s184 + $0x18] sm:$0xff]
        %v226 = vld [vmem:[%s184 + $0x20] sm:$0xff]
        %v227 = vld [vmem:[%s184 + $0x28] sm:$0xff]
        %v228 = vld [vmem:[%s184 + $0x30] sm:$0xff]
        %v229 = vld [vmem:[%s184 + $0x38] sm:$0xff]
        %v230 = vsel %vm221, 1, 0
        %vm231 = vcmp.eq.s32.totalorder %v230, 1
        %v232 = vsel %vm231, %v222, 0.0
        %v233 = vsel %vm231, %v223, 0.0
        %v234 = vsel %vm231, %v224, 0.0
        %v235 = vsel %vm231, %v225, 0.0
        %v236 = vsel %vm231, %v226, 0.0
        %v237 = vsel %vm231, %v227, 0.0
        %v238 = vsel %vm231, %v228, 0.0
        %v239 = vsel %vm231, %v229, 0.0
        %vm240 = vcmask 130048
        %241 = vst.msk [vmem:[%s209] sm:$0xff] %vm240, %v232
        %242 = vst.msk [vmem:[%s209 + $0x8] sm:$0xff] %vm240, %v233
        %243 = vst.msk [vmem:[%s209 + $0x10] sm:$0xff] %vm240, %v234
        %244 = vst.msk [vmem:[%s209 + $0x18] sm:$0xff] %vm240, %v235
        %245 = vst.msk [vmem:[%s209 + $0x20] sm:$0xff] %vm240, %v236
        %246 = vst.msk [vmem:[%s209 + $0x28] sm:$0xff] %vm240, %v237
        %247 = vst.msk [vmem:[%s209 + $0x30] sm:$0xff] %vm240, %v238
        %248 = vst.msk [vmem:[%s209 + $0x38] sm:$0xff] %vm240, %v239
        %s249 = sand.u32 %s108, 1
        %s250 = scalar_lea.sflag [#allocation6], %s249
        %s251 = sand.u32 %s108, 1
        %s252 = smul.addr %s251, 64
        %s253 = scalar_lea.vmem [#allocation7], %s252
        // Predicated region
        $region33: #{tpu_custom_call.1} parent=27 // pred_check
          %p254 = pneg %p118
        $region34: #{tpu_custom_call.1} parent=27 // pred_check_branch
          %256 = sbr.rel (%p254) target = $region36
        $region35: #{tpu_custom_call.1} parent=27 // pred_region
          %s257 = sld [smem:[#allocation3 + %s31]]
          %s258 = smul.u32 8, %s30
          %s260 = ssub.s32 1024, 1024
          %261 = vsyncadd %s250, %s260
          %s262 = smul.addr %s258, 2
          %s263 = sadd.s32 %s257, %s262
          %s264 = smul.addr %s263, 128
          %s265 = scalar_lea.hbm %s3, %s264
          %s266 = sshll.u32 %s253, 4
          %s267 = int_to_ptr.vmem [resolvable:$true] %s266
          %272 = dma.vmem_to_hbm [thread:$0]  %s267, 1024, %s265, %s250, 128, 256, 8
        $region36: #{tpu_custom_call.1} parent=27 // pred_fallthru
          _
      $region28: #{tpu_custom_call.1} parent=5 // pred_fallthru
        _
      %p273 = scmp.le.s32.totalorder 2, %s21
      // Predicated region
      $region37: #{tpu_custom_call.1} parent=5 // pred_check
        %p274 = pneg %p273
      $region38: #{tpu_custom_call.1} parent=5 // pred_check_branch
        %276 = sbr.rel (%p274) target = $region40
      $region39: #{tpu_custom_call.1} parent=5 // pred_region
        %s277 = ssub.s32 %s21, 2
        // Predicated region
        $region41: #{tpu_custom_call.1} parent=39 // pred_check
          %p278 = pneg %p124
        $region42: #{tpu_custom_call.1} parent=39 // pred_check_branch
          %280 = sbr.rel (%p278) target = $region44
        $region43: #{tpu_custom_call.1} parent=39 // pred_region
          %s281 = sand.u32 %s109, 1
          %s282 = scalar_lea.sflag [#allocation6], %s281
          %s283 = sand.u32 %s109, 1
          %s284 = smul.addr %s283, 64
          %s285 = scalar_lea.vmem [#allocation7], %s284
          %286 = dma.done %s282, 1024
        $region44: #{tpu_custom_call.1} parent=39 // pred_fallthru
          _
      $region40: #{tpu_custom_call.1} parent=5 // pred_fallthru
        _
    $region6: #{tpu_custom_call.1} parent=1 // loop_footer
      %s25 = sadd.s32 1, %s21
    $region7: #{tpu_custom_call.1} parent=1 // loop_footer_branch
      %20 = sbr.rel target = $region3
    $region8: #{tpu_custom_call.1} parent=1 // loop_exit
      _
    %287 = vsyncpa [#allocation5], 1
    %s288 = scalar_lea.sflag [#allocation5], 1
    %289 = vsyncpa %s288, 1
    %290 = vsyncpa [#allocation6], 1
    %s291 = scalar_lea.sflag [#allocation6], 1
    %292 = vsyncpa %s291, 1

</llo_original>
